<compile_context>
chip_gen: v5e
topology: v5e:2x2
jax: 0.10.0
libtpu: 0.0.40
codegen_flags: <defaults>
</compile_context>

<pallas_src>
import functools

import jax
import jax.numpy as jnp
from jax import lax
from jax.experimental import pallas as pl
from jax.experimental.pallas import tpu as pltpu


# Contract the shared in_features axis: (B, K) x (N, K) -> (B, N)  ("NT" matmul)
_NT_DIMS = (((1,), (1,)), ((), ()))


def _round_up(n: int, m: int) -> int:
    return ((n + m - 1) // m) * m


def _pick_tile(dim: int, candidates) -> int:
    for c in candidates:
        if dim % c == 0:
            return c
    return dim


def _pad2(a, shape):
    pads = tuple((0, t - s) for s, t in zip(a.shape, shape))
    if all(p == (0, 0) for p in pads):
        return a
    return jnp.pad(a, pads)


# -----------------------------------------------------------------------------
# Aux kernel: weight-only quantities. log_alpha (always) and sigma2=exp(2*ls)
# (training only). Runs once per (out, in) tile, independent of the batch grid,
# so the exp/clip chain never competes with the MXU loop for EUP / store slots.
# -----------------------------------------------------------------------------
def _aux_kernel(w_ref, ls_ref, la_ref, *s2_refs):
    w = w_ref[...]
    ls = ls_ref[...]
    la_ref[...] = jnp.clip(2.0 * ls - 2.0 * jnp.log(1e-8 + jnp.abs(w)),
                           -10.0, 10.0)
    if s2_refs:                      # trace-time branch: training path only
        (s2_ref,) = s2_refs
        s2_ref[...] = jnp.exp(2.0 * ls).astype(s2_ref.dtype)


def _weight_aux(W_pad, ls_pad, *, compute_sigma2: bool, sigma2_dtype):
    out_pad, in_pad = W_pad.shape
    to = _pick_tile(out_pad, (256, 128))
    ti = _pick_tile(in_pad, (512, 256, 128))
    grid = (out_pad // to, in_pad // ti)
    spec = pl.BlockSpec((to, ti), lambda i, j: (i, j))

    out_shape = (jax.ShapeDtypeStruct((out_pad, in_pad), jnp.float32),)
    out_specs = (spec,)
    if compute_sigma2:
        out_shape = out_shape + (jax.ShapeDtypeStruct((out_pad, in_pad),
                                                      sigma2_dtype),)
        out_specs = out_specs + (spec,)

    return pl.pallas_call(
        _aux_kernel,
        grid=grid,
        in_specs=[spec, spec],
        out_specs=out_specs,
        out_shape=out_shape,
        compiler_params=pltpu.CompilerParams(
            dimension_semantics=("parallel", "parallel")),
    )(W_pad, ls_pad)


# -----------------------------------------------------------------------------
# Main matmul kernels.  Grid = (batch_tiles, out_tiles, in_tiles); reduction
# axis (in_features) is last; f32 accumulators in VMEM scratch.
# -----------------------------------------------------------------------------
def _vbd_train_kernel(x_ref, w_ref, s2_ref, b_ref, eps_ref, out_ref,
                      mean_acc, var_acc, *, matmul_dtype):
    k = pl.program_id(2)

    @pl.when(k == 0)
    def _():
        mean_acc[...] = jnp.zeros_like(mean_acc)
        var_acc[...] = jnp.zeros_like(var_acc)

    x = x_ref[...]                                   # f32 (tm, tk)
    mean_acc[...] += lax.dot_general(
        x.astype(matmul_dtype), w_ref[...].astype(matmul_dtype),
        dimension_numbers=_NT_DIMS, preferred_element_type=jnp.float32)
    # square in f32, cast only at the dot (keeps VPU math f32 on all chips)
    var_acc[...] += lax.dot_general(
        (x * x).astype(matmul_dtype), s2_ref[...].astype(matmul_dtype),
        dimension_numbers=_NT_DIMS, preferred_element_type=jnp.float32)

    @pl.when(k == pl.num_programs(2) - 1)
    def _():
        mean = mean_acc[...] + b_ref[...]
        std = jnp.sqrt(var_acc[...] + 1e-8)
        out_ref[...] = (mean + std * eps_ref[...]).astype(out_ref.dtype)


def _vbd_eval_kernel(x_ref, w_ref, b_ref, out_ref, mean_acc, *, matmul_dtype):
    k = pl.program_id(2)

    @pl.when(k == 0)
    def _():
        mean_acc[...] = jnp.zeros_like(mean_acc)

    mean_acc[...] += lax.dot_general(
        x_ref[...].astype(matmul_dtype), w_ref[...].astype(matmul_dtype),
        dimension_numbers=_NT_DIMS, preferred_element_type=jnp.float32)

    @pl.when(k == pl.num_programs(2) - 1)
    def _():
        out_ref[...] = (mean_acc[...] + b_ref[...]).astype(out_ref.dtype)


# -----------------------------------------------------------------------------
# Wrapper
# -----------------------------------------------------------------------------
def vbd_linear(x, W, log_sigma, bias, eps=None, *, training=True,
               matmul_dtype=jnp.float32):
    """Forward pass of Linearvbd1. Returns (output, log_alpha).

    matmul_dtype=jnp.bfloat16 uses the bf16-native MXU path on v6e/v7x
    (accumulation stays f32). Keep f32 when exact f32 parity is required.
    """
    if training and eps is None:
        raise ValueError("training=True requires eps")

    B, in_f = x.shape
    out_f = W.shape[0]

    # Lane-dense padding: last dims -> multiple of 128 lanes, batch -> x8 sublanes.
    B_pad = _round_up(B, 8)
    in_pad = _round_up(in_f, 128)
    out_pad = _round_up(out_f, 128)

    x_pad = _pad2(x, (B_pad, in_pad))
    W_pad = _pad2(W, (out_pad, in_pad))
    ls_pad = _pad2(log_sigma, (out_pad, in_pad))
    b_pad = _pad2(bias, (1, out_pad))

    # Weight-only pass (log_alpha always; sigma2 only needed for training).
    if training:
        log_alpha_pad, sigma2_pad = _weight_aux(
            W_pad, ls_pad, compute_sigma2=True, sigma2_dtype=matmul_dtype)
    else:
        (log_alpha_pad,) = _weight_aux(
            W_pad, ls_pad, compute_sigma2=False, sigma2_dtype=matmul_dtype)

    # Tile sizes: <=~512 KiB per operand tile, double-buffered -> comfortably
    # inside v7x's 64 MiB physical / 32 MiB scoped VMEM as well as v5e/v6e.
    tm = _pick_tile(B_pad, (256, 128, 64, 32, 16, 8))
    tn = _pick_tile(out_pad, (256, 128))
    tk = _pick_tile(in_pad, (512, 256, 128))
    grid = (B_pad // tm, out_pad // tn, in_pad // tk)   # reduction axis last

    x_spec = pl.BlockSpec((tm, tk), lambda i, j, k: (i, k))
    w_spec = pl.BlockSpec((tn, tk), lambda i, j, k: (j, k))
    b_spec = pl.BlockSpec((1, tn), lambda i, j, k: (0, j))
    o_spec = pl.BlockSpec((tm, tn), lambda i, j, k: (i, j))
    out_shape = jax.ShapeDtypeStruct((B_pad, out_pad), jnp.float32)
    cparams = pltpu.CompilerParams(
        dimension_semantics=("parallel", "parallel", "arbitrary"))

    if training:
        eps_pad = _pad2(eps, (B_pad, out_pad))
        kernel = functools.partial(_vbd_train_kernel, matmul_dtype=matmul_dtype)
        out_padded = pl.pallas_call(
            kernel,
            grid=grid,
            in_specs=[x_spec, w_spec, w_spec, b_spec, o_spec],
            out_specs=o_spec,
            out_shape=out_shape,
            scratch_shapes=[pltpu.VMEM((tm, tn), jnp.float32),
                            pltpu.VMEM((tm, tn), jnp.float32)],
            compiler_params=cparams,
        )(x_pad, W_pad, sigma2_pad, b_pad, eps_pad)
    else:
        # Eval path: eps / sigma2 are not kernel inputs at all -> no wasted DMA.
        kernel = functools.partial(_vbd_eval_kernel, matmul_dtype=matmul_dtype)
        out_padded = pl.pallas_call(
            kernel,
            grid=grid,
            in_specs=[x_spec, w_spec, b_spec],
            out_specs=o_spec,
            out_shape=out_shape,
            scratch_shapes=[pltpu.VMEM((tm, tn), jnp.float32)],
            compiler_params=cparams,
        )(x_pad, W_pad, b_pad)

    return out_padded[:B, :out_f], log_alpha_pad[:out_f, :in_f]


if __name__ == "__main__":
    # Small shapes consistent with the module (Linearvbd1(in_features, out_features)).
    in_features = 32
    out_features = 16
    batch = 8

    key = jax.random.PRNGKey(0)
    k_x, k_w, k_eps = jax.random.split(key, 3)

    # reset_parameters(): bias.zero_(), W.normal_(0, 0.001), log_sigma.fill_(-4)
    W = 0.001 * jax.random.normal(k_w, (out_features, in_features), jnp.float32)
    log_sigma = jnp.full((out_features, in_features), -4.0, jnp.float32)
    bias = jnp.zeros((1, out_features), jnp.float32)

    x = jax.random.normal(k_x, (batch, in_features), jnp.float32)
    # TODO(synk): PyTorch samples eps inside forward(); here the N(0,1) noise is
    # drawn with jax.random outside and passed into the kernel.
    eps = jax.random.normal(k_eps, (batch, out_features), jnp.float32)

    # Training-mode forward (default state after construction), f32 MXU path.
    out_train, log_alpha = vbd_linear(x, W, log_sigma, bias, eps, training=True)
    # Eval-mode forward (linear + bias), no eps input.
    out_eval, log_alpha_eval = vbd_linear(x, W, log_sigma, bias, training=False)
    # bf16-operand MXU path (v6e/v7x recommendation), f32 accumulation.
    out_bf16, _ = vbd_linear(x, W, log_sigma, bias, eps, training=True,
                             matmul_dtype=jnp.bfloat16)

    jax.block_until_ready((out_train, out_eval, out_bf16, log_alpha,
                           log_alpha_eval))

    # Pure-JAX reference.
    ref_mean = x @ W.T + bias
    ref_std = jnp.sqrt((x * x) @ jnp.exp(2.0 * log_sigma).T + 1e-8)
    ref_train = ref_mean + ref_std * eps
    ref_la = jnp.clip(2.0 * log_sigma - 2.0 * jnp.log(1e-8 + jnp.abs(W)),
                      -10.0, 10.0)

    assert jnp.allclose(out_train, ref_train, atol=1e-5, rtol=1e-5)
    assert jnp.allclose(out_eval, ref_mean, atol=1e-5, rtol=1e-5)
    assert jnp.allclose(log_alpha, ref_la, atol=1e-5, rtol=1e-5)
    assert jnp.allclose(log_alpha_eval, ref_la, atol=1e-5, rtol=1e-5)
    # bf16 MXU operands: sanity check with a tolerance matching bf16 input rounding.
    assert jnp.allclose(out_bf16, ref_train, atol=1e-2, rtol=5e-2)

    print("KERNEL_OK")
</pallas_src>

<mosaic_0001>
module attributes {stable_mosaic.version = 11 : i64} {
  func.func @_aux_kernel(%arg0: i32, %arg1: i32, %arg2: memref<128x128xf32, #tpu.memory_space<vmem>>, %arg3: memref<128x128xf32, #tpu.memory_space<vmem>>, %arg4: memref<128x128xf32, #tpu.memory_space<vmem>>, %arg5: memref<128x128xf32, #tpu.memory_space<vmem>>) attributes {dimension_semantics = [#tpu.dimension_semantics<parallel>, #tpu.dimension_semantics<parallel>], iteration_bounds = array<i64: 1, 1>, scalar_prefetch = 0 : i64, scratch_operands = 0 : i64, tpu.core_type = #tpu.core_type<tc>, window_params = [{transform_indices = @transform_0, window_bounds = array<i64: 128, 128>}, {transform_indices = @transform_1, window_bounds = array<i64: 128, 128>}, {transform_indices = @transform_2, window_bounds = array<i64: 128, 128>}, {transform_indices = @transform_3, window_bounds = array<i64: 128, 128>}]} {
    %c0 = arith.constant 0 : index
    %c0_0 = arith.constant 0 : index
    %0 = vector.load %arg2[%c0, %c0_0] : memref<128x128xf32, #tpu.memory_space<vmem>>, vector<128x128xf32>
    %c0_1 = arith.constant 0 : index
    %c0_2 = arith.constant 0 : index
    %1 = vector.load %arg3[%c0_1, %c0_2] : memref<128x128xf32, #tpu.memory_space<vmem>>, vector<128x128xf32>
    %cst = arith.constant 2.000000e+00 : f32
    %2 = vector.broadcast %cst : f32 to vector<128x128xf32>
    %3 = arith.mulf %2, %1 : vector<128x128xf32>
    %4 = math.absf %0 : vector<128x128xf32>
    %cst_3 = arith.constant 9.99999993E-9 : f32
    %5 = vector.broadcast %cst_3 : f32 to vector<128x128xf32>
    %6 = arith.addf %5, %4 : vector<128x128xf32>
    %7 = math.log %6 : vector<128x128xf32>
    %cst_4 = arith.constant 2.000000e+00 : f32
    %8 = vector.broadcast %cst_4 : f32 to vector<128x128xf32>
    %9 = arith.mulf %8, %7 : vector<128x128xf32>
    %10 = arith.subf %3, %9 : vector<128x128xf32>
    %cst_5 = arith.constant -1.000000e+01 : f32
    %cst_6 = arith.constant 1.000000e+01 : f32
    %11 = vector.broadcast %cst_5 : f32 to vector<128x128xf32>
    %12 = arith.maximumf %11, %10 : vector<128x128xf32>
    %13 = vector.broadcast %cst_6 : f32 to vector<128x128xf32>
    %14 = arith.minimumf %13, %12 : vector<128x128xf32>
    %c0_7 = arith.constant 0 : index
    %c0_8 = arith.constant 0 : index
    %15 = vector.load %arg4[%c0_7, %c0_8] : memref<128x128xf32, #tpu.memory_space<vmem>>, vector<128x128xf32>
    tpu.vector_store %arg4[%c0_7, %c0_8], %14 {strides = array<i32>} : memref<128x128xf32, #tpu.memory_space<vmem>>, vector<128x128xf32>,
    %cst_9 = arith.constant 2.000000e+00 : f32
    %16 = vector.broadcast %cst_9 : f32 to vector<128x128xf32>
    %17 = arith.mulf %16, %1 : vector<128x128xf32>
    %18 = math.exp %17 : vector<128x128xf32>
    %c0_10 = arith.constant 0 : index
    %c0_11 = arith.constant 0 : index
    %19 = vector.load %arg5[%c0_10, %c0_11] : memref<128x128xf32, #tpu.memory_space<vmem>>, vector<128x128xf32>
    tpu.vector_store %arg5[%c0_10, %c0_11], %18 {strides = array<i32>} : memref<128x128xf32, #tpu.memory_space<vmem>>, vector<128x128xf32>,
    return
  }
  func.func @transform_0(%arg0: i32, %arg1: i32) -> (i32, i32) {
    %c0_i32 = arith.constant 0 : i32
    return %arg0, %arg1 : i32, i32
  }
  func.func @transform_1(%arg0: i32, %arg1: i32) -> (i32, i32) {
    %c0_i32 = arith.constant 0 : i32
    return %arg0, %arg1 : i32, i32
  }
  func.func @transform_2(%arg0: i32, %arg1: i32) -> (i32, i32) {
    %c0_i32 = arith.constant 0 : i32
    return %arg0, %arg1 : i32, i32
  }
  func.func @transform_3(%arg0: i32, %arg1: i32) -> (i32, i32) {
    %c0_i32 = arith.constant 0 : i32
    return %arg0, %arg1 : i32, i32
  }
}

</mosaic_0001>

<llo_original>
// kernel: tpu_custom_call.1
$region0: #{tpu_custom_call.1}
  #allocation0 [shape = 'u32[]', space=smem, size = 0x4, offset = 0x4, fixed_abs, tag = 'smem constant byte address 0x4 - core index']
  #allocation1 [shape = 'u32[72,128]{1,0:T(1,128)}', space=vmem, size = 0x9000, scoped, tag = 'internal scratch']
  %s0 = inlined_call_operand.hbm [shape: f32[128,128], index: 0, kind: input, shape index: {}]
  %s1 = inlined_call_operand.hbm [shape: f32[128,128], index: 1, kind: input, shape index: {}]
  %s2 = inlined_call_operand.hbm [shape: f32[128,128], index: 2, kind: output, shape index: {0}]
  %s3 = inlined_call_operand.hbm [shape: f32[128,128], index: 3, kind: output, shape index: {1}]
  %4 = xla_tuple %s2, %s3
  %s5 = sld [smem:[#allocation0]]
  $region34: #{tpu_custom_call.1} parent=0
    _
  %s7 = ssub.s32 1, %s5
  %s8 = scalar_select 0, %s7, %s5
  $region1: #{tpu_custom_call.1} parent=0
    #allocation2 [shape = 'u8[65536]{0}', space=vmem, size = 0x10000, scoped, tag = 'input window, operand 0, single buffered']
    #allocation3 [shape = 's32[1]{0}', space=sflag, size = 0x4, scoped, tag = 'scoped memory for tpu_custom_call.1']
    #allocation4 [shape = 's32[1]{0}', space=sflag, size = 0x4, scoped, tag = 'scoped memory for tpu_custom_call.1']
    #allocation5 [shape = 'u8[65536]{0}', space=vmem, size = 0x10000, scoped, tag = 'input window, operand 1, single buffered']
    #allocation6 [shape = 's32[1]{0}', space=sflag, size = 0x4, scoped, tag = 'scoped memory for tpu_custom_call.1']
    #allocation7 [shape = 'u8[65536]{0}', space=vmem, size = 0x10000, scoped, tag = 'output window, operand 0, single buffered']
    #allocation8 [shape = 'u8[65536]{0}', space=vmem, size = 0x10000, scoped, tag = 'output window, operand 1, single buffered']
    #allocation9 [shape = 's32[1]{0}', space=sflag, size = 0x4, scoped, tag = 'scoped memory for tpu_custom_call.1']
    %9 = vsyncpa [#allocation3], 0
    %10 = vsyncpa [#allocation6], 0
    %11 = vsyncpa [#allocation4], 0
    %12 = vsyncpa [#allocation9], 0
    // Predicated region
    $region2: #{tpu_custom_call.1} parent=1 // pred_check
      _
    $region3: #{tpu_custom_call.1} parent=1 // pred_check_branch
      %14 = sbr.rel (0) target = $region5
    $region4: #{tpu_custom_call.1} parent=1 // pred_region
      %16 = vsyncadd [#allocation3], 0
      %s17 = sshll.u32 %s0, 4
      %s18 = int_to_ptr.hbm [resolvable:$true] %s17
      %s19 = sshll.u32 [#allocation2], 4
      %s20 = int_to_ptr.vmem [resolvable:$true] %s19
      %25 = dma.hbm_to_vmem [thread:$0]  %s18, 2048, %s20, [#allocation3], 128, 128, 8
    $region5: #{tpu_custom_call.1} parent=1 // pred_fallthru
      _
    // Predicated region
    $region6: #{tpu_custom_call.1} parent=1 // pred_check
      _
    $region7: #{tpu_custom_call.1} parent=1 // pred_check_branch
      %27 = sbr.rel (0) target = $region9
    $region8: #{tpu_custom_call.1} parent=1 // pred_region
      %29 = vsyncadd [#allocation6], 0
      %s30 = sshll.u32 %s1, 4
      %s31 = int_to_ptr.hbm [resolvable:$true] %s30
      %s32 = sshll.u32 [#allocation5], 4
      %s33 = int_to_ptr.vmem [resolvable:$true] %s32
      %38 = dma.hbm_to_vmem [thread:$0]  %s31, 2048, %s33, [#allocation6], 128, 128, 8
    $region9: #{tpu_custom_call.1} parent=1 // pred_fallthru
      _
    // Predicated region
    $region10: #{tpu_custom_call.1} parent=1 // pred_check
      _
    $region11: #{tpu_custom_call.1} parent=1 // pred_check_branch
      %40 = sbr.rel (0) target = $region13
    $region12: #{tpu_custom_call.1} parent=1 // pred_region
      %42 = dma.done [#allocation3], 2048
    $region13: #{tpu_custom_call.1} parent=1 // pred_fallthru
      _
    // Predicated region
    $region14: #{tpu_custom_call.1} parent=1 // pred_check
      _
    $region15: #{tpu_custom_call.1} parent=1 // pred_check_branch
      %44 = sbr.rel (0) target = $region17
    $region16: #{tpu_custom_call.1} parent=1 // pred_region
      %46 = dma.done [#allocation6], 2048
    $region17: #{tpu_custom_call.1} parent=1 // pred_fallthru
      _
    %v47 = vld [vmem:[#allocation2] sm:$0xff]
    %v48 = vld [vmem:[#allocation2 + $0x8] sm:$0xff]
    %v49 = vld [vmem:[#allocation2 + $0x10] sm:$0xff]
    %v50 = vld [vmem:[#allocation2 + $0x18] sm:$0xff]
    %v51 = vld [vmem:[#allocation2 + $0x20] sm:$0xff]
    %v52 = vld [vmem:[#allocation2 + $0x28] sm:$0xff]
    %v53 = vld [vmem:[#allocation2 + $0x30] sm:$0xff]
    %v54 = vld [vmem:[#allocation2 + $0x38] sm:$0xff]
    %v55 = vld [vmem:[#allocation2 + $0x40] sm:$0xff]
    %v56 = vld [vmem:[#allocation2 + $0x48] sm:$0xff]
    %v57 = vld [vmem:[#allocation2 + $0x50] sm:$0xff]
    %v58 = vld [vmem:[#allocation2 + $0x58] sm:$0xff]
    %v59 = vld [vmem:[#allocation2 + $0x60] sm:$0xff]
    %v60 = vld [vmem:[#allocation2 + $0x68] sm:$0xff]
    %v61 = vld [vmem:[#allocation2 + $0x70] sm:$0xff]
    %v62 = vld [vmem:[#allocation2 + $0x78] sm:$0xff]
    %v63 = vld [vmem:[#allocation5] sm:$0xff]
    %v64 = vld [vmem:[#allocation5 + $0x8] sm:$0xff]
    %v65 = vld [vmem:[#allocation5 + $0x10] sm:$0xff]
    %v66 = vld [vmem:[#allocation5 + $0x18] sm:$0xff]
    %v67 = vld [vmem:[#allocation5 + $0x20] sm:$0xff]
    %v68 = vld [vmem:[#allocation5 + $0x28] sm:$0xff]
    %v69 = vld [vmem:[#allocation5 + $0x30] sm:$0xff]
    %v70 = vld [vmem:[#allocation5 + $0x38] sm:$0xff]
    %v71 = vld [vmem:[#allocation5 + $0x40] sm:$0xff]
    %v72 = vld [vmem:[#allocation5 + $0x48] sm:$0xff]
    %v73 = vld [vmem:[#allocation5 + $0x50] sm:$0xff]
    %v74 = vld [vmem:[#allocation5 + $0x58] sm:$0xff]
    %v75 = vld [vmem:[#allocation5 + $0x60] sm:$0xff]
    %v76 = vld [vmem:[#allocation5 + $0x68] sm:$0xff]
    %v77 = vld [vmem:[#allocation5 + $0x70] sm:$0xff]
    %v78 = vld [vmem:[#allocation5 + $0x78] sm:$0xff]
    %v79 = vmul.f32 %v63, 2.0
    %v80 = vmul.f32 %v64, 2.0
    %v81 = vmul.f32 %v65, 2.0
    %v82 = vmul.f32 %v66, 2.0
    %v83 = vmul.f32 %v67, 2.0
    %v84 = vmul.f32 %v68, 2.0
    %v85 = vmul.f32 %v69, 2.0
    %v86 = vmul.f32 %v70, 2.0
    %v87 = vmul.f32 %v71, 2.0
    %v88 = vmul.f32 %v72, 2.0
    %v89 = vmul.f32 %v73, 2.0
    %v90 = vmul.f32 %v74, 2.0
    %v91 = vmul.f32 %v75, 2.0
    %v92 = vmul.f32 %v76, 2.0
    %v93 = vmul.f32 %v77, 2.0
    %v94 = vmul.f32 %v78, 2.0
    %v95 = vand.u32 2147483647, %v47
    %v96 = vand.u32 2147483647, %v48
    %v97 = vand.u32 2147483647, %v49
    %v98 = vand.u32 2147483647, %v50
    %v99 = vand.u32 2147483647, %v51
    %v100 = vand.u32 2147483647, %v52
    %v101 = vand.u32 2147483647, %v53
    %v102 = vand.u32 2147483647, %v54
    %v103 = vand.u32 2147483647, %v55
    %v104 = vand.u32 2147483647, %v56
    %v105 = vand.u32 2147483647, %v57
    %v106 = vand.u32 2147483647, %v58
    %v107 = vand.u32 2147483647, %v59
    %v108 = vand.u32 2147483647, %v60
    %v109 = vand.u32 2147483647, %v61
    %v110 = vand.u32 2147483647, %v62
    %v111 = vadd.f32 %v95, 1e-08
    %v112 = vadd.f32 %v96, 1e-08
    %v113 = vadd.f32 %v97, 1e-08
    %v114 = vadd.f32 %v98, 1e-08
    %v115 = vadd.f32 %v99, 1e-08
    %v116 = vadd.f32 %v100, 1e-08
    %v117 = vadd.f32 %v101, 1e-08
    %v118 = vadd.f32 %v102, 1e-08
    %v119 = vadd.f32 %v103, 1e-08
    %v120 = vadd.f32 %v104, 1e-08
    %v121 = vadd.f32 %v105, 1e-08
    %v122 = vadd.f32 %v106, 1e-08
    %v123 = vadd.f32 %v107, 1e-08
    %v124 = vadd.f32 %v108, 1e-08
    %v125 = vadd.f32 %v109, 1e-08
    %v126 = vadd.f32 %v110, 1e-08
    %v127 = vlog2.pop %v111
    %v128 = vmul.f32 %v127, 0.6931472
    %v129 = vlog2.pop %v112
    %v130 = vmul.f32 %v129, 0.6931472
    %v131 = vlog2.pop %v113
    %v132 = vmul.f32 %v131, 0.6931472
    %v133 = vlog2.pop %v114
    %v134 = vmul.f32 %v133, 0.6931472
    %v135 = vlog2.pop %v115
    %v136 = vmul.f32 %v135, 0.6931472
    %v137 = vlog2.pop %v116
    %v138 = vmul.f32 %v137, 0.6931472
    %v139 = vlog2.pop %v117
    %v140 = vmul.f32 %v139, 0.6931472
    %v141 = vlog2.pop %v118
    %v142 = vmul.f32 %v141, 0.6931472
    %v143 = vlog2.pop %v119
    %v144 = vmul.f32 %v143, 0.6931472
    %v145 = vlog2.pop %v120
    %v146 = vmul.f32 %v145, 0.6931472
    %v147 = vlog2.pop %v121
    %v148 = vmul.f32 %v147, 0.6931472
    %v149 = vlog2.pop %v122
    %v150 = vmul.f32 %v149, 0.6931472
    %v151 = vlog2.pop %v123
    %v152 = vmul.f32 %v151, 0.6931472
    %v153 = vlog2.pop %v124
    %v154 = vmul.f32 %v153, 0.6931472
    %v155 = vlog2.pop %v125
    %v156 = vmul.f32 %v155, 0.6931472
    %v157 = vlog2.pop %v126
    %v158 = vmul.f32 %v157, 0.6931472
    %v159 = vmul.f32 %v128, 2.0
    %v160 = vmul.f32 %v130, 2.0
    %v161 = vmul.f32 %v132, 2.0
    %v162 = vmul.f32 %v134, 2.0
    %v163 = vmul.f32 %v136, 2.0
    %v164 = vmul.f32 %v138, 2.0
    %v165 = vmul.f32 %v140, 2.0
    %v166 = vmul.f32 %v142, 2.0
    %v167 = vmul.f32 %v144, 2.0
    %v168 = vmul.f32 %v146, 2.0
    %v169 = vmul.f32 %v148, 2.0
    %v170 = vmul.f32 %v150, 2.0
    %v171 = vmul.f32 %v152, 2.0
    %v172 = vmul.f32 %v154, 2.0
    %v173 = vmul.f32 %v156, 2.0
    %v174 = vmul.f32 %v158, 2.0
    %v175 = vsub.f32 %v79, %v159
    %v176 = vsub.f32 %v80, %v160
    %v177 = vsub.f32 %v81, %v161
    %v178 = vsub.f32 %v82, %v162
    %v179 = vsub.f32 %v83, %v163
    %v180 = vsub.f32 %v84, %v164
    %v181 = vsub.f32 %v85, %v165
    %v182 = vsub.f32 %v86, %v166
    %v183 = vsub.f32 %v87, %v167
    %v184 = vsub.f32 %v88, %v168
    %v185 = vsub.f32 %v89, %v169
    %v186 = vsub.f32 %v90, %v170
    %v187 = vsub.f32 %v91, %v171
    %v188 = vsub.f32 %v92, %v172
    %v189 = vsub.f32 %v93, %v173
    %v190 = vsub.f32 %v94, %v174
    %v191 = vmax.f32 %v175, -10.0
    %v192 = vmax.f32 %v176, -10.0
    %v193 = vmax.f32 %v177, -10.0
    %v194 = vmax.f32 %v178, -10.0
    %v195 = vmax.f32 %v179, -10.0
    %v196 = vmax.f32 %v180, -10.0
    %v197 = vmax.f32 %v181, -10.0
    %v198 = vmax.f32 %v182, -10.0
    %v199 = vmax.f32 %v183, -10.0
    %v200 = vmax.f32 %v184, -10.0
    %v201 = vmax.f32 %v185, -10.0
    %v202 = vmax.f32 %v186, -10.0
    %v203 = vmax.f32 %v187, -10.0
    %v204 = vmax.f32 %v188, -10.0
    %v205 = vmax.f32 %v189, -10.0
    %v206 = vmax.f32 %v190, -10.0
    %v207 = vmin.f32 %v191, 10.0
    %v208 = vmin.f32 %v192, 10.0
    %v209 = vmin.f32 %v193, 10.0
    %v210 = vmin.f32 %v194, 10.0
    %v211 = vmin.f32 %v195, 10.0
    %v212 = vmin.f32 %v196, 10.0
    %v213 = vmin.f32 %v197, 10.0
    %v214 = vmin.f32 %v198, 10.0
    %v215 = vmin.f32 %v199, 10.0
    %v216 = vmin.f32 %v200, 10.0
    %v217 = vmin.f32 %v201, 10.0
    %v218 = vmin.f32 %v202, 10.0
    %v219 = vmin.f32 %v203, 10.0
    %v220 = vmin.f32 %v204, 10.0
    %v221 = vmin.f32 %v205, 10.0
    %v222 = vmin.f32 %v206, 10.0
    %223 = vst [vmem:[#allocation7] sm:$0xff] %v207
    %224 = vst [vmem:[#allocation7 + $0x8] sm:$0xff] %v208
    %225 = vst [vmem:[#allocation7 + $0x10] sm:$0xff] %v209
    %226 = vst [vmem:[#allocation7 + $0x18] sm:$0xff] %v210
    %227 = vst [vmem:[#allocation7 + $0x20] sm:$0xff] %v211
    %228 = vst [vmem:[#allocation7 + $0x28] sm:$0xff] %v212
    %229 = vst [vmem:[#allocation7 + $0x30] sm:$0xff] %v213
    %230 = vst [vmem:[#allocation7 + $0x38] sm:$0xff] %v214
    %231 = vst [vmem:[#allocation7 + $0x40] sm:$0xff] %v215
    %232 = vst [vmem:[#allocation7 + $0x48] sm:$0xff] %v216
    %233 = vst [vmem:[#allocation7 + $0x50] sm:$0xff] %v217
    %234 = vst [vmem:[#allocation7 + $0x58] sm:$0xff] %v218
    %235 = vst [vmem:[#allocation7 + $0x60] sm:$0xff] %v219
    %236 = vst [vmem:[#allocation7 + $0x68] sm:$0xff] %v220
    %237 = vst [vmem:[#allocation7 + $0x70] sm:$0xff] %v221
    %238 = vst [vmem:[#allocation7 + $0x78] sm:$0xff] %v222
    %v239 = vmul.f32 %v79, 1.442695
    %v240 = vpow.pop %v239
    %v241 = vmul.f32 %v80, 1.442695
    %v242 = vpow.pop %v241
    %v243 = vmul.f32 %v81, 1.442695
    %v244 = vpow.pop %v243
    %v245 = vmul.f32 %v82, 1.442695
    %v246 = vpow.pop %v245
    %v247 = vmul.f32 %v83, 1.442695
    %v248 = vpow.pop %v247
    %v249 = vmul.f32 %v84, 1.442695
    %v250 = vpow.pop %v249
    %v251 = vmul.f32 %v85, 1.442695
    %v252 = vpow.pop %v251
    %v253 = vmul.f32 %v86, 1.442695
    %v254 = vpow.pop %v253
    %v255 = vmul.f32 %v87, 1.442695
    %v256 = vpow.pop %v255
    %v257 = vmul.f32 %v88, 1.442695
    %v258 = vpow.pop %v257
    %v259 = vmul.f32 %v89, 1.442695
    %v260 = vpow.pop %v259
    %v261 = vmul.f32 %v90, 1.442695
    %v262 = vpow.pop %v261
    %v263 = vmul.f32 %v91, 1.442695
    %v264 = vpow.pop %v263
    %v265 = vmul.f32 %v92, 1.442695
    %v266 = vpow.pop %v265
    %v267 = vmul.f32 %v93, 1.442695
    %v268 = vpow.pop %v267
    %v269 = vmul.f32 %v94, 1.442695
    %v270 = vpow.pop %v269
    %271 = vst [vmem:[#allocation8] sm:$0xff] %v240
    %272 = vst [vmem:[#allocation8 + $0x8] sm:$0xff] %v242
    %273 = vst [vmem:[#allocation8 + $0x10] sm:$0xff] %v244
    %274 = vst [vmem:[#allocation8 + $0x18] sm:$0xff] %v246
    %275 = vst [vmem:[#allocation8 + $0x20] sm:$0xff] %v248
    %276 = vst [vmem:[#allocation8 + $0x28] sm:$0xff] %v250
    %277 = vst [vmem:[#allocation8 + $0x30] sm:$0xff] %v252
    %278 = vst [vmem:[#allocation8 + $0x38] sm:$0xff] %v254
    %279 = vst [vmem:[#allocation8 + $0x40] sm:$0xff] %v256
    %280 = vst [vmem:[#allocation8 + $0x48] sm:$0xff] %v258
    %281 = vst [vmem:[#allocation8 + $0x50] sm:$0xff] %v260
    %282 = vst [vmem:[#allocation8 + $0x58] sm:$0xff] %v262
    %283 = vst [vmem:[#allocation8 + $0x60] sm:$0xff] %v264
    %284 = vst [vmem:[#allocation8 + $0x68] sm:$0xff] %v266
    %285 = vst [vmem:[#allocation8 + $0x70] sm:$0xff] %v268
    %286 = vst [vmem:[#allocation8 + $0x78] sm:$0xff] %v270
    // Predicated region
    $region18: #{tpu_custom_call.1} parent=1 // pred_check
      _
    $region19: #{tpu_custom_call.1} parent=1 // pred_check_branch
      %288 = sbr.rel (0) target = $region21
    $region20: #{tpu_custom_call.1} parent=1 // pred_region
      %290 = vsyncadd [#allocation4], 0
      %s291 = sshll.u32 [#allocation7], 4
      %s292 = int_to_ptr.vmem [resolvable:$true] %s291
      %s293 = sshll.u32 %s2, 4
      %s294 = int_to_ptr.hbm [resolvable:$true] %s293
      %299 = dma.vmem_to_hbm [thread:$0]  %s292, 2048, %s294, [#allocation4], 128, 128, 8
    $region21: #{tpu_custom_call.1} parent=1 // pred_fallthru
      _
    // Predicated region
    $region22: #{tpu_custom_call.1} parent=1 // pred_check
      _
    $region23: #{tpu_custom_call.1} parent=1 // pred_check_branch
      %301 = sbr.rel (0) target = $region25
    $region24: #{tpu_custom_call.1} parent=1 // pred_region
      %303 = vsyncadd [#allocation9], 0
      %s304 = sshll.u32 [#allocation8], 4
      %s305 = int_to_ptr.vmem [resolvable:$true] %s304
      %s306 = sshll.u32 %s3, 4
      %s307 = int_to_ptr.hbm [resolvable:$true] %s306
      %312 = dma.vmem_to_hbm [thread:$0]  %s305, 2048, %s307, [#allocation9], 128, 128, 8
    $region25: #{tpu_custom_call.1} parent=1 // pred_fallthru
      _
    // Predicated region
    $region26: #{tpu_custom_call.1} parent=1 // pred_check
      _
    $region27: #{tpu_custom_call.1} parent=1 // pred_check_branch
      %314 = sbr.rel (0) target = $region29
    $region28: #{tpu_custom_call.1} parent=1 // pred_region
      %316 = dma.done [#allocation4], 2048
    $region29: #{tpu_custom_call.1} parent=1 // pred_fallthru
      _
    // Predicated region
    $region30: #{tpu_custom_call.1} parent=1 // pred_check
      _
    $region31: #{tpu_custom_call.1} parent=1 // pred_check_branch
      %318 = sbr.rel (0) target = $region33
    $region32: #{tpu_custom_call.1} parent=1 // pred_region
      %320 = dma.done [#allocation9], 2048
    $region33: #{tpu_custom_call.1} parent=1 // pred_fallthru
      _
    %321 = vsyncpa [#allocation3], 1
    %322 = vsyncpa [#allocation6], 1
    %323 = vsyncpa [#allocation4], 1
    %324 = vsyncpa [#allocation9], 1

</llo_original>
